<compile_context>
chip_gen: v6e
topology: v6e:2x2x1
jax: 0.10.0
libtpu: 0.0.40
codegen_flags: <defaults>
</compile_context>

<pallas_src>
import functools

import jax
import jax.numpy as jnp
from jax.experimental import pallas as pl
from jax.experimental.pallas import tpu as pltpu

F32 = jnp.float32


# ----------------------------- in-kernel helpers -----------------------------
def _erf(x):
    # Abramowitz & Stegun 7.1.26 polynomial erf (|err| < 1.5e-7); exact divide for parity.
    a1, a2, a3, a4, a5 = 0.254829592, -0.284496736, 1.421413741, -1.453152027, 1.061405429
    p = 0.3275911
    s = jnp.where(x >= 0.0, 1.0, -1.0)
    ax = jnp.abs(x)
    t = 1.0 / (1.0 + p * ax)
    poly = ((((a5 * t + a4) * t + a3) * t + a2) * t + a1) * t
    return s * (1.0 - poly * jnp.exp(-ax * ax))


def _gelu(x):
    # exact (erf) GELU, matching torch.nn.functional.gelu default
    return 0.5 * x * (1.0 + _erf(x * 0.7071067811865476))


def _choose_tile(hw, c):
    """Lane-dense spatial tile for the fused W-path kernel.

    Per-step VMEM = 3 streamed tensors (x, x1, out) x 2 pipeline buffers x c x T x 4B;
    keep it under ~12 MiB so we stay inside the 16 MiB v5e scoped-VMEM default (and well
    under v6e/v7x).  Per-step HBM traffic is then MiB-scale, amortizing the ~0.35 us
    fixed per-step overhead.  T is a multiple of 128 (unmasked stores) unless it covers
    the full spatial extent.
    """
    budget = 12 * 1024 * 1024
    t = budget // (6 * c * 4)
    t = max(128, (t // 128) * 128)
    return hw if hw <= t else t


# ------------- fused 1x1 conv (W path) + residual add + activation -------------
def _wres_act_kernel(x_ref, x1_ref, w_ref, b_ref, *rest, activation):
    # x: [Ci, T], x1: [Co, T], w: [Co, Ci], b: [Co, 1]  ->  o: [Co, T]
    o_ref = rest[-1]
    y = jnp.dot(w_ref[...], x_ref[...], preferred_element_type=F32)
    s = y + b_ref[...] + x1_ref[...]
    if activation == 'relu':
        s = jnp.maximum(s, 0.0)
    elif activation == 'gelu':
        s = _gelu(s)
    elif activation in ('sine', 'adaptive_sine'):
        s = jnp.sin(rest[0][0, 0] * s)          # freq scalar from SMEM
    # 'identity' (is_last=True): no-op
    o_ref[...] = s


def wconv_residual_act(x3d, x1_3d, w, bias, freq, activation):
    """x3d: [B, Ci, HW], x1_3d: [B, Co, HW], w: [Co, Ci], bias: [Co, 1] -> [B, Co, HW]."""
    b, ci, hw = x3d.shape
    co = w.shape[0]
    t = _choose_tile(hw, max(ci, co))
    grid = (b, pl.cdiv(hw, t))                  # edge tile (if any) is masked on writeback

    in_specs = [
        pl.BlockSpec((None, ci, t), lambda bi, ti: (bi, 0, ti)),
        pl.BlockSpec((None, co, t), lambda bi, ti: (bi, 0, ti)),
        pl.BlockSpec((co, ci), lambda bi, ti: (0, 0)),
        pl.BlockSpec((co, 1), lambda bi, ti: (0, 0)),
    ]
    args = [x3d, x1_3d, w, bias]
    if activation in ('sine', 'adaptive_sine'):
        in_specs.append(pl.BlockSpec(memory_space=pltpu.MemorySpace.SMEM))
        args.append(freq)

    return pl.pallas_call(
        functools.partial(_wres_act_kernel, activation=activation),
        out_shape=jax.ShapeDtypeStruct((b, co, hw), F32),
        grid=grid,
        in_specs=in_specs,
        out_specs=pl.BlockSpec((None, co, t), lambda bi, ti: (bi, 0, ti)),
        compiler_params=pltpu.CompilerParams(
            dimension_semantics=("parallel", "parallel")),
    )(*args)


# --------------------------------- forward -------------------------------------
@functools.partial(jax.jit, static_argnames=('wn1', 'wn2', 'activation', 'is_last'))
def fourier_layer(params, x, *, wn1, wn2, activation='relu', is_last=False):
    """Pallas/TPU forward of FourierLayer: act(FourierConv2D(x) + Conv1x1(x)), NCHW."""
    b, c, h, w = x.shape
    assert h >= 2 * wn1, "low/high frequency regions overlap (h < 2*wavenumber1)"
    x = x.astype(F32)

    # ---- spectral branch --------------------------------------------------------
    # TODO(synk): FFT has no Pallas primitive; rfft2/irfft2 stay in jnp.fft.
    x_ft = jnp.fft.rfft2(x)                                  # [B, Ci, H, Wf] complex64
    wf = w // 2 + 1
    low = x_ft[:, :, :wn1, :wn2]
    high = x_ft[:, :, h - wn1:, :wn2]
    w1, w2 = params['weights1'], params['weights2']
    co = w1.shape[1]

    def _mix(reg, wgt):
        # Real einsum on view_as_real data (no complex cross terms), exactly as the
        # PyTorch module.  Tiny contraction -> stays in XLA (a Pallas call here is
        # pure launch/step overhead with 16x-padded blocks).
        re = jnp.einsum('bixy,ioxy->boxy', reg.real, wgt[..., 0])
        im = jnp.einsum('bixy,ioxy->boxy', reg.imag, wgt[..., 1])
        return re + 1j * im

    out_low = _mix(low, w1)                                  # [B, Co, wn1, wn2]
    out_high = _mix(high, w2)
    # single concatenate + pad instead of zeros + two dynamic-update-slice scatters
    mid = jnp.zeros((b, co, h - 2 * wn1, wn2), out_low.dtype)
    out_ft = jnp.concatenate([out_low, mid, out_high], axis=2)   # [B, Co, H, wn2]
    out_ft = jnp.pad(out_ft, ((0, 0), (0, 0), (0, 0), (0, wf - wn2)))
    x1 = jnp.fft.irfft2(out_ft, s=(h, w)).astype(F32)            # [B, Co, H, W]

    # ---- fused 1x1 conv + residual + activation (single Pallas kernel) ----------
    act = 'identity' if is_last else activation
    out = wconv_residual_act(x.reshape(b, c, h * w),
                             x1.reshape(b, co, h * w),
                             params['w_conv'], params['b_conv'],
                             params['act_freq'], act)
    return out.reshape(b, co, h, w)


# --------------------------- deterministic params ------------------------------
def init_params(key, c, wn1, wn2):
    k1, k2, k3, k4 = jax.random.split(key, 4)
    scale = 1.0 / (c * c)
    bound = 1.0 / float(c) ** 0.5                     # Conv2d default init bound (fan_in=c)
    return {
        'weights1': scale * jax.random.uniform(k1, (c, c, wn1, wn2, 2), F32),
        'weights2': scale * jax.random.uniform(k2, (c, c, wn1, wn2, 2), F32),
        'w_conv': jax.random.uniform(k3, (c, c), F32, -bound, bound),   # [out, in]
        'b_conv': jax.random.uniform(k4, (c, 1), F32, -bound, bound),
        'act_freq': jnp.ones((1, 1), F32),                              # AdaptiveSine freq
    }


# --------------------------- pure-jnp reference (self-check) -------------------
def _reference_forward(params, x, wn1, wn2, activation='relu', is_last=False):
    b, c, h, w = x.shape
    x = x.astype(F32)
    x_ft = jnp.fft.rfft2(x)

    def mul(reg, wgt):
        re = jnp.einsum('bixy,ioxy->boxy', reg.real, wgt[..., 0])
        im = jnp.einsum('bixy,ioxy->boxy', reg.imag, wgt[..., 1])
        return re + 1j * im

    wf = w // 2 + 1
    out_ft = jnp.zeros((b, c, h, wf), x_ft.dtype)
    out_ft = out_ft.at[:, :, :wn1, :wn2].set(mul(x_ft[:, :, :wn1, :wn2], params['weights1']))
    out_ft = out_ft.at[:, :, h - wn1:, :wn2].set(mul(x_ft[:, :, h - wn1:, :wn2], params['weights2']))
    x1 = jnp.fft.irfft2(out_ft, s=(h, w))
    x2 = jnp.einsum('oi,bixy->boxy', params['w_conv'], x) + params['b_conv'].reshape(1, c, 1, 1)
    s = x1 + x2
    if is_last:
        return s
    if activation == 'relu':
        s = jnp.maximum(s, 0.0)
    elif activation == 'gelu':
        s = 0.5 * s * (1.0 + jax.lax.erf(s * 0.7071067811865476))
    elif activation in ('sine', 'adaptive_sine'):
        s = jnp.sin(params['act_freq'][0, 0] * s)
    return s


if __name__ == "__main__":
    key = jax.random.PRNGKey(0)
    k_x, k_p = jax.random.split(key)
    B, C, H, W = 2, 32, 16, 16
    WN1 = WN2 = 4

    x = jax.random.normal(k_x, (B, C, H, W), F32)
    params = init_params(k_p, C, WN1, WN2)

    out = fourier_layer(params, x, wn1=WN1, wn2=WN2, activation='relu', is_last=False)
    out = jax.block_until_ready(out)

    assert out.shape == (B, C, H, W), out.shape
    assert bool(jnp.all(jnp.isfinite(out)))
    ref = _reference_forward(params, x, WN1, WN2, activation='relu', is_last=False)
    err = float(jnp.max(jnp.abs(out - ref)))
    # all-f32 path; tolerance covers MXU f32-matmul pass decomposition vs XLA einsum
    assert err < 2e-2, f"max abs err {err}"
    print("KERNEL_OK")
</pallas_src>

<mosaic_0001>
module attributes {stable_mosaic.version = 11 : i64} {
  func.func @_wres_act_kernel(%arg0: i32, %arg1: i32, %arg2: memref<1x32x256xf32, #tpu.memory_space<vmem>>, %arg3: memref<1x32x256xf32, #tpu.memory_space<vmem>>, %arg4: memref<32x32xf32, #tpu.memory_space<vmem>>, %arg5: memref<32x1xf32, #tpu.memory_space<vmem>>, %arg6: memref<1x32x256xf32, #tpu.memory_space<vmem>>) attributes {dimension_semantics = [#tpu.dimension_semantics<parallel>, #tpu.dimension_semantics<parallel>], iteration_bounds = array<i64: 2, 1>, scalar_prefetch = 0 : i64, scratch_operands = 0 : i64, tpu.core_type = #tpu.core_type<tc>, window_params = [{transform_indices = @transform_0, window_bounds = array<i64: 1, 32, 256>}, {transform_indices = @transform_1, window_bounds = array<i64: 1, 32, 256>}, {pipeline_mode = #tpu.pipeline_mode<synchronous>, transform_indices = @transform_2, window_bounds = array<i64: 32, 32>}, {pipeline_mode = #tpu.pipeline_mode<synchronous>, transform_indices = @transform_3, window_bounds = array<i64: 32, 1>}, {transform_indices = @transform_4, window_bounds = array<i64: 1, 32, 256>}]} {
    %c0 = arith.constant 0 : index
    %c0_0 = arith.constant 0 : index
    %0 = vector.load %arg4[%c0, %c0_0] : memref<32x32xf32, #tpu.memory_space<vmem>>, vector<32x32xf32>
    %c0_1 = arith.constant 0 : index
    %c0_2 = arith.constant 0 : index
    %c0_3 = arith.constant 0 : index
    %1 = vector.load %arg2[%c0_1, %c0_2, %c0_3] : memref<1x32x256xf32, #tpu.memory_space<vmem>>, vector<1x32x256xf32>
    %2 = vector.shape_cast %1 : vector<1x32x256xf32> to vector<32x256xf32>
    %cst = arith.constant dense<0.000000e+00> : vector<32x256xf32>
    %3 = tpu.matmul %0, %2, %cst {dimension_numbers = #tpu.dot_dimension_numbers<[1], [0], [0], [1], [0, 0, 1, 1], [], []>} : vector<32x32xf32>, vector<32x256xf32>, vector<32x256xf32> -> vector<32x256xf32>
    %c0_4 = arith.constant 0 : index
    %c0_5 = arith.constant 0 : index
    %4 = vector.load %arg5[%c0_4, %c0_5] : memref<32x1xf32, #tpu.memory_space<vmem>>, vector<32x1xf32>
    %5 = vector.broadcast %4 : vector<32x1xf32> to vector<32x256xf32>
    %6 = arith.addf %3, %5 : vector<32x256xf32>
    %c0_6 = arith.constant 0 : index
    %c0_7 = arith.constant 0 : index
    %c0_8 = arith.constant 0 : index
    %7 = vector.load %arg3[%c0_6, %c0_7, %c0_8] : memref<1x32x256xf32, #tpu.memory_space<vmem>>, vector<1x32x256xf32>
    %8 = vector.shape_cast %7 : vector<1x32x256xf32> to vector<32x256xf32>
    %9 = arith.addf %6, %8 : vector<32x256xf32>
    %cst_9 = arith.constant 0.000000e+00 : f32
    %10 = vector.broadcast %cst_9 : f32 to vector<32x256xf32>
    %11 = arith.maximumf %9, %10 : vector<32x256xf32>
    %c0_10 = arith.constant 0 : index
    %c0_11 = arith.constant 0 : index
    %c0_12 = arith.constant 0 : index
    %12 = vector.load %arg6[%c0_10, %c0_11, %c0_12] : memref<1x32x256xf32, #tpu.memory_space<vmem>>, vector<1x32x256xf32>
    %13 = vector.shape_cast %12 : vector<1x32x256xf32> to vector<32x256xf32>
    %14 = vector.shape_cast %11 : vector<32x256xf32> to vector<1x32x256xf32>
    tpu.vector_store %arg6[%c0_10, %c0_11, %c0_12], %14 {strides = array<i32>} : memref<1x32x256xf32, #tpu.memory_space<vmem>>, vector<1x32x256xf32>,
    return
  }
  func.func @transform_0(%arg0: i32, %arg1: i32) -> (i32, i32, i32) {
    %c0_i32 = arith.constant 0 : i32
    %c0_i32_0 = arith.constant 0 : i32
    return %arg0, %c0_i32, %arg1 : i32, i32, i32
  }
  func.func @transform_1(%arg0: i32, %arg1: i32) -> (i32, i32, i32) {
    %c0_i32 = arith.constant 0 : i32
    %c0_i32_0 = arith.constant 0 : i32
    return %arg0, %c0_i32, %arg1 : i32, i32, i32
  }
  func.func @transform_2(%arg0: i32, %arg1: i32) -> (i32, i32) {
    %c0_i32 = arith.constant 0 : i32
    %c0_i32_0 = arith.constant 0 : i32
    %c0_i32_1 = arith.constant 0 : i32
    return %c0_i32, %c0_i32_0 : i32, i32
  }
  func.func @transform_3(%arg0: i32, %arg1: i32) -> (i32, i32) {
    %c0_i32 = arith.constant 0 : i32
    %c0_i32_0 = arith.constant 0 : i32
    %c0_i32_1 = arith.constant 0 : i32
    return %c0_i32, %c0_i32_0 : i32, i32
  }
  func.func @transform_4(%arg0: i32, %arg1: i32) -> (i32, i32, i32) {
    %c0_i32 = arith.constant 0 : i32
    %c0_i32_0 = arith.constant 0 : i32
    return %arg0, %c0_i32, %arg1 : i32, i32, i32
  }
}

</mosaic_0001>

<llo_original>
// kernel: reverse.1
$region0: #{reverse.1}
  #allocation0 [shape = 's32[1]{0}', space=sflag, size = 0x4, scoped, tag = 'scoped memory for reverse.1']
  %s0 = inlined_call_operand.vmem [shape: f32[2,32,16,7], index: 0, kind: input, shape index: {}]
  %s1 = inlined_call_operand.vmem [shape: f32[2,32,16,7], index: 1, kind: output, shape index: {}]
  %s2 = scalar_lea.vmem %s0, 96
  %v3 = vld [vmem:[%s2] sm:$0xff]
  %4 = vst [vmem:[%s1] sm:$0xff] %v3
  %s5 = scalar_lea.vmem %s0, 208
  %v6 = vld [vmem:[%s5] sm:$0xff]
  %s7 = scalar_lea.vmem %s1, 112
  %8 = vst [vmem:[%s7] sm:$0xff] %v6
  %s9 = scalar_lea.vmem %s0, 80
  %v10 = vld [vmem:[%s9] sm:$0xff]
  %s11 = scalar_lea.vmem %s1, 16
  %12 = vst [vmem:[%s11] sm:$0xff] %v10
  %s13 = scalar_lea.vmem %s0, 192
  %v14 = vld [vmem:[%s13] sm:$0xff]
  %s15 = scalar_lea.vmem %s1, 128
  %16 = vst [vmem:[%s15] sm:$0xff] %v14
  %s17 = scalar_lea.vmem %s0, 64
  %v18 = vld [vmem:[%s17] sm:$0xff]
  %s19 = scalar_lea.vmem %s1, 32
  %20 = vst [vmem:[%s19] sm:$0xff] %v18
  %s21 = scalar_lea.vmem %s0, 176
  %v22 = vld [vmem:[%s21] sm:$0xff]
  %s23 = scalar_lea.vmem %s1, 144
  %24 = vst [vmem:[%s23] sm:$0xff] %v22
  %s25 = scalar_lea.vmem %s0, 48
  %v26 = vld [vmem:[%s25] sm:$0xff]
  %s27 = scalar_lea.vmem %s1, 48
  %28 = vst [vmem:[%s27] sm:$0xff] %v26
  %s29 = scalar_lea.vmem %s0, 160
  %v30 = vld [vmem:[%s29] sm:$0xff]
  %s31 = scalar_lea.vmem %s1, 160
  %32 = vst [vmem:[%s31] sm:$0xff] %v30
  %s33 = scalar_lea.vmem %s0, 32
  %v34 = vld [vmem:[%s33] sm:$0xff]
  %s35 = scalar_lea.vmem %s1, 64
  %36 = vst [vmem:[%s35] sm:$0xff] %v34
  %s37 = scalar_lea.vmem %s0, 144
  %v38 = vld [vmem:[%s37] sm:$0xff]
  %s39 = scalar_lea.vmem %s1, 176
  %40 = vst [vmem:[%s39] sm:$0xff] %v38
  %s41 = scalar_lea.vmem %s0, 16
  %v42 = vld [vmem:[%s41] sm:$0xff]
  %s43 = scalar_lea.vmem %s1, 80
  %44 = vst [vmem:[%s43] sm:$0xff] %v42
  %s45 = scalar_lea.vmem %s0, 128
  %v46 = vld [vmem:[%s45] sm:$0xff]
  %s47 = scalar_lea.vmem %s1, 192
  %48 = vst [vmem:[%s47] sm:$0xff] %v46
  %v49 = vld [vmem:[%s0] sm:$0xff]
  %s50 = scalar_lea.vmem %s1, 96
  %51 = vst [vmem:[%s50] sm:$0xff] %v49
  %s52 = scalar_lea.vmem %s0, 112
  %v53 = vld [vmem:[%s52] sm:$0xff]
  %s54 = scalar_lea.vmem %s1, 208
  %55 = vst [vmem:[%s54] sm:$0xff] %v53
  %s56 = scalar_lea.vmem %s0, 104
  %v57 = vld [vmem:[%s56] sm:$0xff]
  %s58 = scalar_lea.vmem %s1, 8
  %59 = vst [vmem:[%s58] sm:$0xff] %v57
  %s60 = scalar_lea.vmem %s0, 216
  %v61 = vld [vmem:[%s60] sm:$0xff]
  %s62 = scalar_lea.vmem %s1, 120
  %63 = vst [vmem:[%s62] sm:$0xff] %v61
  %s64 = scalar_lea.vmem %s0, 88
  %v65 = vld [vmem:[%s64] sm:$0xff]
  %s66 = scalar_lea.vmem %s1, 24
  %67 = vst [vmem:[%s66] sm:$0xff] %v65
  %s68 = scalar_lea.vmem %s0, 200
  %v69 = vld [vmem:[%s68] sm:$0xff]
  %s70 = scalar_lea.vmem %s1, 136
  %71 = vst [vmem:[%s70] sm:$0xff] %v69
  %s72 = scalar_lea.vmem %s0, 72
  %v73 = vld [vmem:[%s72] sm:$0xff]
  %s74 = scalar_lea.vmem %s1, 40
  %75 = vst [vmem:[%s74] sm:$0xff] %v73
  %s76 = scalar_lea.vmem %s0, 184
  %v77 = vld [vmem:[%s76] sm:$0xff]
  %s78 = scalar_lea.vmem %s1, 152
  %79 = vst [vmem:[%s78] sm:$0xff] %v77
  %s80 = scalar_lea.vmem %s0, 56
  %v81 = vld [vmem:[%s80] sm:$0xff]
  %s82 = scalar_lea.vmem %s1, 56
  %83 = vst [vmem:[%s82] sm:$0xff] %v81
  %s84 = scalar_lea.vmem %s0, 168
  %v85 = vld [vmem:[%s84] sm:$0xff]
  %s86 = scalar_lea.vmem %s1, 168
  %87 = vst [vmem:[%s86] sm:$0xff] %v85
  %s88 = scalar_lea.vmem %s0, 40
  %v89 = vld [vmem:[%s88] sm:$0xff]
  %s90 = scalar_lea.vmem %s1, 72
  %91 = vst [vmem:[%s90] sm:$0xff] %v89
  %s92 = scalar_lea.vmem %s0, 152
  %v93 = vld [vmem:[%s92] sm:$0xff]
  %s94 = scalar_lea.vmem %s1, 184
  %95 = vst [vmem:[%s94] sm:$0xff] %v93
  %s96 = scalar_lea.vmem %s0, 24
  %v97 = vld [vmem:[%s96] sm:$0xff]
  %s98 = scalar_lea.vmem %s1, 88
  %99 = vst [vmem:[%s98] sm:$0xff] %v97
  %s100 = scalar_lea.vmem %s0, 136
  %v101 = vld [vmem:[%s100] sm:$0xff]
  %s102 = scalar_lea.vmem %s1, 200
  %103 = vst [vmem:[%s102] sm:$0xff] %v101
  %s104 = scalar_lea.vmem %s0, 8
  %v105 = vld [vmem:[%s104] sm:$0xff]
  %s106 = scalar_lea.vmem %s1, 104
  %107 = vst [vmem:[%s106] sm:$0xff] %v105
  %s108 = scalar_lea.vmem %s0, 120
  %v109 = vld [vmem:[%s108] sm:$0xff]
  %s110 = scalar_lea.vmem %s1, 216
  %111 = vst [vmem:[%s110] sm:$0xff] %v109

// kernel: fourier_layer.1
$region0: #{fourier_layer.1}
  #allocation0 [shape = 'u32[]', space=smem, size = 0x4, offset = 0x4, fixed_abs, tag = 'smem constant byte address 0x4 - core index']
  #allocation1 [shape = 'u32[144,128]{1,0:T(1,128)}', space=vmem, size = 0x12000, scoped, tag = 'internal scratch']
  %s0 = inlined_call_operand.vmem [shape: f32[2,32,256], index: 0, kind: input, shape index: {}]
  %s1 = inlined_call_operand.vmem [shape: f32[2,32,256], index: 1, kind: input, shape index: {}]
  %s2 = inlined_call_operand.vmem [shape: f32[32,32], index: 2, kind: input, shape index: {}]
  %s3 = inlined_call_operand.vmem [shape: f32[32,1], index: 3, kind: input, shape index: {}]
  %s4 = inlined_call_operand.vmem [shape: f32[2,32,256], index: 4, kind: output, shape index: {}]
  %s5 = sld [smem:[#allocation0]]
  $region49: #{fourier_layer.1} parent=0
    _
  %s7 = ssub.s32 1, %s5
  %s8 = scalar_select 0, %s7, %s5
  loop: start=0, step=1, limit=4
  $region2: #{fourier_layer.1} parent=0 // loop_pre_header
    _
  $region3: #{fourier_layer.1} parent=0 // loop_header
    %s10 = sphi 0, %s14
    %p11 = scmp.ge.s32.totalorder %s10, 4
    %s17 = sphi 0, %s29
    %s18 = sphi 0, %s25
    %s19 = sphi 0, %s17
    %s20 = sphi 0, %s18
    %s21 = sphi 0, %s19
    %s22 = sphi 0, %s20
    %s34 = sphi 0, %s36
    %s37 = sphi 0, %s34
    %s38 = sphi 0, %s37
    %s54 = sphi 0, %s38
    %s62 = sphi 0, %s64
    %s65 = sphi 0, %s62
    %s66 = sphi 0, %s65
    %s82 = sphi 0, %s66
    %s86 = sphi 0, %s86
    %s88 = sphi 0, %s86
    %s89 = sphi 0, %s88
    %s103 = sphi 0, %s89
    %s107 = sphi 0, %s107
    %s109 = sphi 0, %s107
    %s110 = sphi 0, %s109
    %s124 = sphi 0, %s110
    %s132 = sphi 0, %s134
    %s135 = sphi 0, %s132
    %s136 = sphi 0, %s135
    %s152 = sphi 0, %s136
  $region4: #{fourier_layer.1} parent=0 // loop_header_branch
    %13 = sbr.rel (%p11) target = $region8
  $region5: #{fourier_layer.1} parent=0 // loop_body
    %s15 = ssub.s32 %s10, 1
    %s16 = ssub.s32 %s10, 2
    %s23 = sadd.s32 1, %s18
    %p24 = scmp.ge.s32.totalorder %s23, 1
    %s25 = scalar_select %p24, 0, %s23
    %s26 = sadd.s32 1, %s17
    %s27 = scalar_select %p24, %s26, %s17
    %p28 = scmp.ge.s32.totalorder %s27, 2
    %s29 = scalar_select %p28, 0, %s27
    %s30 = ssub.s32 %s17, %s29
    %s31 = ssub.s32 %s18, %s25
    %s32 = sor.u32 %s30, %s31
    %p33 = scmp.eq.s32.totalorder %s32, 0
    %s35 = sadd.s32 %s34, 1
    %s36 = scalar_select %p33, %s34, %s35
    %p39 = pneg %p33
    %p40 = scmp.eq.s32.totalorder %s10, 1
    %p41 = por %p39, %p40
    %p42 = scmp.ne.s32.totalorder %s34, %s37
    %p43 = scmp.eq.s32.totalorder %s10, 0
    %p44 = por %p42, %p43
    %p45 = scmp.ne.s32.totalorder %s34, %s37
    %p46 = scmp.eq.s32.totalorder %s15, 1
    %p47 = por %p45, %p46
    %p48 = scmp.ne.s32.totalorder %s37, %s38
    %p49 = scmp.eq.s32.totalorder %s15, 0
    %p50 = por %p48, %p49
    %p51 = scmp.ne.s32.totalorder %s37, %s38
    %p52 = scmp.eq.s32.totalorder %s16, 1
    %p53 = por %p51, %p52
    %p55 = scmp.ne.s32.totalorder %s38, %s54
    %p56 = scmp.eq.s32.totalorder %s16, 0
    %p57 = por %p55, %p56
    %s58 = ssub.s32 %s17, %s29
    %s59 = ssub.s32 %s18, %s25
    %s60 = sor.u32 %s58, %s59
    %p61 = scmp.eq.s32.totalorder %s60, 0
    %s63 = sadd.s32 %s62, 1
    %s64 = scalar_select %p61, %s62, %s63
    %p67 = pneg %p61
    %p68 = scmp.eq.s32.totalorder %s10, 1
    %p69 = por %p67, %p68
    %p70 = scmp.ne.s32.totalorder %s62, %s65
    %p71 = scmp.eq.s32.totalorder %s10, 0
    %p72 = por %p70, %p71
    %p73 = scmp.ne.s32.totalorder %s62, %s65
    %p74 = scmp.eq.s32.totalorder %s15, 1
    %p75 = por %p73, %p74
    %p76 = scmp.ne.s32.totalorder %s65, %s66
    %p77 = scmp.eq.s32.totalorder %s15, 0
    %p78 = por %p76, %p77
    %p79 = scmp.ne.s32.totalorder %s65, %s66
    %p80 = scmp.eq.s32.totalorder %s16, 1
    %p81 = por %p79, %p80
    %p83 = scmp.ne.s32.totalorder %s66, %s82
    %p84 = scmp.eq.s32.totalorder %s16, 0
    %p85 = por %p83, %p84
    %s87 = sadd.s32 %s86, 1
    %p90 = scmp.eq.s32.totalorder %s10, 1
    %p91 = scmp.ne.s32.totalorder %s86, %s88
    %p92 = scmp.eq.s32.totalorder %s10, 0
    %p93 = por %p91, %p92
    %p94 = scmp.ne.s32.totalorder %s86, %s88
    %p95 = scmp.eq.s32.totalorder %s15, 1
    %p96 = por %p94, %p95
    %p97 = scmp.ne.s32.totalorder %s88, %s89
    %p98 = scmp.eq.s32.totalorder %s15, 0
    %p99 = por %p97, %p98
    %p100 = scmp.ne.s32.totalorder %s88, %s89
    %p101 = scmp.eq.s32.totalorder %s16, 1
    %p102 = por %p100, %p101
    %p104 = scmp.ne.s32.totalorder %s89, %s103
    %p105 = scmp.eq.s32.totalorder %s16, 0
    %p106 = por %p104, %p105
    %s108 = sadd.s32 %s107, 1
    %p111 = scmp.eq.s32.totalorder %s10, 1
    %p112 = scmp.ne.s32.totalorder %s107, %s109
    %p113 = scmp.eq.s32.totalorder %s10, 0
    %p114 = por %p112, %p113
    %p115 = scmp.ne.s32.totalorder %s107, %s109
    %p116 = scmp.eq.s32.totalorder %s15, 1
    %p117 = por %p115, %p116
    %p118 = scmp.ne.s32.totalorder %s109, %s110
    %p119 = scmp.eq.s32.totalorder %s15, 0
    %p120 = por %p118, %p119
    %p121 = scmp.ne.s32.totalorder %s109, %s110
    %p122 = scmp.eq.s32.totalorder %s16, 1
    %p123 = por %p121, %p122
    %p125 = scmp.ne.s32.totalorder %s110, %s124
    %p126 = scmp.eq.s32.totalorder %s16, 0
    %p127 = por %p125, %p126
    %s128 = ssub.s32 %s17, %s29
    %s129 = ssub.s32 %s18, %s25
    %s130 = sor.u32 %s128, %s129
    %p131 = scmp.eq.s32.totalorder %s130, 0
    %s133 = sadd.s32 %s132, 1
    %s134 = scalar_select %p131, %s132, %s133
    %p137 = pneg %p131
    %p138 = scmp.eq.s32.totalorder %s10, 1
    %p139 = por %p137, %p138
    %p140 = scmp.ne.s32.totalorder %s132, %s135
    %p141 = scmp.eq.s32.totalorder %s10, 0
    %p142 = por %p140, %p141
    %p143 = scmp.ne.s32.totalorder %s132, %s135
    %p144 = scmp.eq.s32.totalorder %s15, 1
    %p145 = por %p143, %p144
    %p146 = scmp.ne.s32.totalorder %s135, %s136
    %p147 = scmp.eq.s32.totalorder %s15, 0
    %p148 = por %p146, %p147
    %p149 = scmp.ne.s32.totalorder %s135, %s136
    %p150 = scmp.eq.s32.totalorder %s16, 1
    %p151 = por %p149, %p150
    %p153 = scmp.ne.s32.totalorder %s136, %s152
    %p154 = scmp.eq.s32.totalorder %s16, 0
    %p155 = por %p153, %p154
    %p156 = scmp.le.s32.totalorder 1, %s10
    %p157 = scmp.lt.s32.totalorder %s10, 3
    %p158 = pnand %p156, %p157
    %p159 = pneg %p158
    // Predicated region
    $region9: #{fourier_layer.1} parent=5 // pred_check
      _
    $region10: #{fourier_layer.1} parent=5 // pred_check_branch
      %161 = sbr.rel (%p158) target = $region12
    $region11: #{fourier_layer.1} parent=5 // pred_region
      %s162 = ssub.s32 %s10, 1
      // Predicated region
      $region13: #{fourier_layer.1} parent=11 // pred_check
        %p163 = pneg %p99
      $region14: #{fourier_layer.1} parent=11 // pred_check_branch
        %165 = sbr.rel (%p163) target = $region16
      $region15: #{fourier_layer.1} parent=11 // pred_region
        _
      $region16: #{fourier_layer.1} parent=11 // pred_fallthru
        _
      // Predicated region
      $region17: #{fourier_layer.1} parent=11 // pred_check
        %p166 = pneg %p120
      $region18: #{fourier_layer.1} parent=11 // pred_check_branch
        %168 = sbr.rel (%p166) target = $region20
      $region19: #{fourier_layer.1} parent=11 // pred_region
        _
      $region20: #{fourier_layer.1} parent=11 // pred_fallthru
        _
    $region12: #{fourier_layer.1} parent=5 // pred_fallthru
      _
    %p169 = scmp.lt.s32.totalorder %s10, 2
    // Predicated region
    $region21: #{fourier_layer.1} parent=5 // pred_check
      %p170 = pneg %p169
    $region22: #{fourier_layer.1} parent=5 // pred_check_branch
      %172 = sbr.rel (%p170) target = $region24
    $region23: #{fourier_layer.1} parent=5 // pred_region
      // Predicated region
      $region25: #{fourier_layer.1} parent=23 // pred_check
        %p173 = pneg %p44
      $region26: #{fourier_layer.1} parent=23 // pred_check_branch
        %175 = sbr.rel (%p173) target = $region28
      $region27: #{fourier_layer.1} parent=23 // pred_region
        %s176 = smul.u32 2, %s18
        %p177 = scmp.lt.s32.totalorder %s17, 1
        %s178 = scalar_select %p177, %s17, 1
        %p179 = scmp.lt.s32.totalorder %s176, 1
        %s180 = scalar_select %p179, %s176, 1
        %s181 = smul.addr %s178, 8
        %s182 = sadd.s32 %s180, %s181
        %s183 = smul.addr %s182, 8
        %s184 = scalar_lea.vmem %s0, %s183
        %s185 = smul.u32 2, %s18
      $region28: #{fourier_layer.1} parent=23 // pred_fallthru
        _
      // Predicated region
      $region29: #{fourier_layer.1} parent=23 // pred_check
        %p186 = pneg %p72
      $region30: #{fourier_layer.1} parent=23 // pred_check_branch
        %188 = sbr.rel (%p186) target = $region32
      $region31: #{fourier_layer.1} parent=23 // pred_region
        %s189 = smul.u32 2, %s18
        %p190 = scmp.lt.s32.totalorder %s17, 1
        %s191 = scalar_select %p190, %s17, 1
        %p192 = scmp.lt.s32.totalorder %s189, 1
        %s193 = scalar_select %p192, %s189, 1
        %s194 = smul.addr %s191, 8
        %s195 = sadd.s32 %s193, %s194
        %s196 = smul.addr %s195, 8
        %s197 = scalar_lea.vmem %s1, %s196
        %s198 = smul.u32 2, %s18
      $region32: #{fourier_layer.1} parent=23 // pred_fallthru
        _
    $region24: #{fourier_layer.1} parent=5 // pred_fallthru
      _
    %p199 = scmp.le.s32.totalorder 1, %s10
    %p200 = scmp.lt.s32.totalorder %s10, 3
    %p201 = pnand %p199, %p200
    %p202 = pneg %p201
    // Predicated region
    $region33: #{fourier_layer.1} parent=5 // pred_check
      _
    $region34: #{fourier_layer.1} parent=5 // pred_check_branch
      %204 = sbr.rel (%p201) target = $region36
    $region35: #{fourier_layer.1} parent=5 // pred_region
      %s205 = ssub.s32 %s10, 1
      %s206 = smul.u32 2, %s20
      %p207 = scmp.lt.s32.totalorder %s19, 1
      %s208 = scalar_select %p207, %s19, 1
      %p209 = scmp.lt.s32.totalorder %s206, 1
      %s210 = scalar_select %p209, %s206, 1
      %s211 = smul.addr %s208, 8
      %s212 = sadd.s32 %s210, %s211
      %s213 = smul.addr %s212, 8
      %s214 = scalar_lea.vmem %s0, %s213
      %p215 = pneg %p50
      %p216 = pneg %p47
      %s217 = smul.u32 2, %s20
      %p218 = scmp.lt.s32.totalorder %s19, 1
      %s219 = scalar_select %p218, %s19, 1
      %p220 = scmp.lt.s32.totalorder %s217, 1
      %s221 = scalar_select %p220, %s217, 1
      %s222 = smul.addr %s219, 8
      %s223 = sadd.s32 %s221, %s222
      %s224 = smul.addr %s223, 8
      %s225 = scalar_lea.vmem %s1, %s224
      %p226 = pneg %p78
      %p227 = pneg %p75
      %p228 = pneg %p99
      %p229 = pneg %p96
      %p230 = pneg %p120
      %p231 = pneg %p117
      %p232 = pneg %p148
      %p233 = pneg %p145
      %s234 = smul.u32 2, %s20
      %p235 = scmp.lt.s32.totalorder %s19, 1
      %s236 = scalar_select %p235, %s19, 1
      %p237 = scmp.lt.s32.totalorder %s234, 1
      %s238 = scalar_select %p237, %s234, 1
      %s239 = smul.addr %s236, 8
      %s240 = sadd.s32 %s238, %s239
      %s241 = smul.addr %s240, 8
      %s242 = scalar_lea.vmem %s4, %s241
      %s243 = smul.u32 2, %s20
      %p244 = scmp.lt.s32.totalorder %s19, 1
      %s245 = scalar_select %p244, %s19, 1
      %p246 = scmp.lt.s32.totalorder %s243, 1
      %s247 = scalar_select %p246, %s243, 1
      %s248 = smul.addr %s245, 8
      %s249 = sadd.s32 %s247, %s248
      %s250 = smul.addr %s249, 8
      %s251 = scalar_lea.vmem %s0, %s250
      %s252 = smul.u32 2, %s20
      %s253 = smul.u32 2, %s20
      %p254 = scmp.lt.s32.totalorder %s19, 1
      %s255 = scalar_select %p254, %s19, 1
      %p256 = scmp.lt.s32.totalorder %s253, 1
      %s257 = scalar_select %p256, %s253, 1
      %s258 = smul.addr %s255, 8
      %s259 = sadd.s32 %s257, %s258
      %s260 = smul.addr %s259, 8
      %s261 = scalar_lea.vmem %s1, %s260
      %s262 = smul.u32 2, %s20
      %s263 = smul.u32 2, %s20
      %p264 = scmp.lt.s32.totalorder %s19, 1
      %s265 = scalar_select %p264, %s19, 1
      %p266 = scmp.lt.s32.totalorder %s263, 1
      %s267 = scalar_select %p266, %s263, 1
      %s268 = smul.addr %s265, 8
      %s269 = sadd.s32 %s267, %s268
      %s270 = smul.addr %s269, 8
      %s271 = scalar_lea.vmem %s4, %s270
      %s272 = smul.u32 2, %s20
      %v273 = vld [vmem:[%s2] sm:$0xff]
      %v274 = vld [vmem:[%s2 + $0x8] sm:$0xff]
      %v275 = vld [vmem:[%s2 + $0x10] sm:$0xff]
      %v276 = vld [vmem:[%s2 + $0x18] sm:$0xff]
      %v277 = vld [vmem:[%s251] sm:$0xff]
      %v278 = vld [vmem:[%s251 + $0x8] sm:$0xff]
      %v279 = vld [vmem:[%s251 + $0x10] sm:$0xff]
      %v280 = vld [vmem:[%s251 + $0x18] sm:$0xff]
      %v281 = vld [vmem:[%s251 + $0x20] sm:$0xff]
      %v282 = vld [vmem:[%s251 + $0x28] sm:$0xff]
      %v283 = vld [vmem:[%s251 + $0x30] sm:$0xff]
      %v284 = vld [vmem:[%s251 + $0x38] sm:$0xff]
      %v285 = vld [vmem:[%s3] sm:$0xff]
      %v286 = vld [vmem:[%s3 + $0x8] sm:$0xff]
      %v287 = vld [vmem:[%s3 + $0x10] sm:$0xff]
      %v288 = vld [vmem:[%s3 + $0x18] sm:$0xff]
      %290 = vset.pattern.permute.xlu0 0
      %291 = vperm.xlu0 %290, %v285
      %v292 = vpop.permute.xlu0 %291
      %295 = vset.pattern.permute.xlu0 0
      %296 = vperm.xlu0 %295, %v286
      %v297 = vpop.permute.xlu0 %296
      %300 = vset.pattern.permute.xlu0 0
      %301 = vperm.xlu0 %300, %v287
      %v302 = vpop.permute.xlu0 %301
      %305 = vset.pattern.permute.xlu0 0
      %306 = vperm.xlu0 %305, %v288
      %v307 = vpop.permute.xlu0 %306
      %vm309 = vcmask 261120
      %v311 = vsel %vm309, %v273, 0
      %v314 = vsel %vm309, %v274, 0
      %v317 = vsel %vm309, %v275, 0
      %v320 = vsel %vm309, %v276, 0
      %322 = vmatprep.subr.mxu0 0.0
      %323 = vmatpush1.msra.mxu0 0.0
      %324 = vmatprep.subr.mxu0 0.0
      %325 = vmatpush1.msra.mxu0 0.0
      %326 = vmatprep.subr.mxu0 0.0
      %327 = vmatpush1.msra.mxu0 0.0
      %328 = vmatprep.subr.mxu0 0.0
      %329 = vmatpush1.msra.mxu0 0.0
      %330 = vmatprep.subr.mxu0 0.0
      %331 = vmatpush1.msra.mxu0 0.0
      %332 = vmatprep.subr.mxu0 0.0
      %333 = vmatpush1.msra.mxu0 0.0
      %334 = vmatprep.subr.mxu0 0.0
      %335 = vmatpush1.msra.mxu0 0.0
      %336 = vmatprep.subr.mxu0 0.0
      %337 = vmatpush1.msra.mxu0 0.0
      %338 = vmatprep.subr.mxu0 0.0
      %339 = vmatpush1.msra.mxu0 0.0
      %340 = vmatprep.subr.mxu0 0.0
      %341 = vmatpush1.msra.mxu0 0.0
      %342 = vmatprep.subr.mxu0 0.0
      %343 = vmatpush1.msra.mxu0 0.0
      %344 = vmatprep.subr.mxu0 0.0
      %345 = vmatpush1.msra.mxu0 0.0
      %346 = vmatprep.subr.mxu0 %v284
      %347 = vmatpush1.msra.mxu0 %v283
      %348 = vmatprep.subr.mxu0 %v282
      %349 = vmatpush1.msra.mxu0 %v281
      %350 = vmatprep.subr.mxu0 %v280
      %351 = vmatpush1.msra.mxu0 %v279
      %352 = vmatprep.subr.mxu0 %v278
      %353 = vmatpush1.msra.mxu0 %v277
      %354 = vmatprep.subr.mxu0 0.0
      %355 = vmatpush2.msra.mxu0 0.0
      %356 = vmatprep.subr.mxu0 0.0
      %357 = vmatpush2.msra.mxu0 0.0
      %358 = vmatprep.subr.mxu0 0.0
      %359 = vmatpush2.msra.mxu0 0.0
      %360 = vmatprep.subr.mxu0 0.0
      %361 = vmatpush2.msra.mxu0 0.0
      %362 = vmatprep.subr.mxu0 0.0
      %363 = vmatpush2.msra.mxu0 0.0
      %364 = vmatprep.subr.mxu0 0.0
      %365 = vmatpush2.msra.mxu0 0.0
      %366 = vmatprep.subr.mxu0 0.0
      %367 = vmatpush2.msra.mxu0 0.0
      %368 = vmatprep.subr.mxu0 0.0
      %369 = vmatpush2.msra.mxu0 0.0
      %370 = vmatprep.subr.mxu0 0.0
      %371 = vmatpush2.msra.mxu0 0.0
      %372 = vmatprep.subr.mxu0 0.0
      %373 = vmatpush2.msra.mxu0 0.0
      %374 = vmatprep.subr.mxu0 0.0
      %375 = vmatpush2.msra.mxu0 0.0
      %376 = vmatprep.subr.mxu0 0.0
      %377 = vmatpush2.msra.mxu0 0.0
      %378 = vmatprep.subr.mxu0 0.0
      %379 = vmatpush2.msra.mxu0 0.0
      %380 = vmatprep.subr.mxu0 0.0
      %381 = vmatpush2.msra.mxu0 0.0
      %382 = vmatprep.subr.mxu0 0.0
      %383 = vmatpush2.msra.mxu0 0.0
      %384 = vmatprep.subr.mxu0 0.0
      %385 = vmatpush2.msra.mxu0 0.0
      %386 = vmatprep.mubr.f32.mxu0 0.0
      %387 = vmatmul.mubr.f32.gmra.mxu0 %v311
      %v388 = vpop.f32.mrf.mxu0
      %v389 = vadd.f32 %v292, %v388
      %v390 = vpop.f32.mrf.mxu0
      %v391 = vadd.f32 %v292, %v390
      %392 = vmatprep.mubr.f32.mxu0 0.0
      %393 = vmatmul.mubr.f32.gmra.mxu0 %v314
      %v394 = vpop.f32.mrf.mxu0
      %v395 = vadd.f32 %v297, %v394
      %v396 = vpop.f32.mrf.mxu0
      %v397 = vadd.f32 %v297, %v396
      %398 = vmatprep.mubr.f32.mxu0 0.0
      %399 = vmatmul.mubr.f32.gmra.mxu0 %v317
      %v400 = vpop.f32.mrf.mxu0
      %v401 = vadd.f32 %v302, %v400
      %v402 = vpop.f32.mrf.mxu0
      %v403 = vadd.f32 %v302, %v402
      %404 = vmatprep.mubr.f32.mxu0 0.0
      %405 = vmatmul.mubr.f32.gmra.mxu0 %v320
      %v406 = vpop.f32.mrf.mxu0
      %v407 = vadd.f32 %v307, %v406
      %v408 = vpop.f32.mrf.mxu0
      %v409 = vadd.f32 %v307, %v408
      %410 = vdwg.mxu0
      %v411 = vld [vmem:[%s261] sm:$0xff]
      %v412 = vld [vmem:[%s261 + $0x8] sm:$0xff]
      %v413 = vld [vmem:[%s261 + $0x10] sm:$0xff]
      %v414 = vld [vmem:[%s261 + $0x18] sm:$0xff]
      %v415 = vld [vmem:[%s261 + $0x20] sm:$0xff]
      %v416 = vld [vmem:[%s261 + $0x28] sm:$0xff]
      %v417 = vld [vmem:[%s261 + $0x30] sm:$0xff]
      %v418 = vld [vmem:[%s261 + $0x38] sm:$0xff]
      %v419 = vadd.f32 %v389, %v411
      %v420 = vadd.f32 %v391, %v412
      %v421 = vadd.f32 %v395, %v413
      %v422 = vadd.f32 %v397, %v414
      %v423 = vadd.f32 %v401, %v415
      %v424 = vadd.f32 %v403, %v416
      %v425 = vadd.f32 %v407, %v417
      %v426 = vadd.f32 %v409, %v418
      %v427 = vmax.f32 %v419, 0.0
      %v428 = vmax.f32 %v420, 0.0
      %v429 = vmax.f32 %v421, 0.0
      %v430 = vmax.f32 %v422, 0.0
      %v431 = vmax.f32 %v423, 0.0
      %v432 = vmax.f32 %v424, 0.0
      %v433 = vmax.f32 %v425, 0.0
      %v434 = vmax.f32 %v426, 0.0
      %435 = vst [vmem:[%s271] sm:$0xff] %v427
      %436 = vst [vmem:[%s271 + $0x8] sm:$0xff] %v428
      %437 = vst [vmem:[%s271 + $0x10] sm:$0xff] %v429
      %438 = vst [vmem:[%s271 + $0x18] sm:$0xff] %v430
      %439 = vst [vmem:[%s271 + $0x20] sm:$0xff] %v431
      %440 = vst [vmem:[%s271 + $0x28] sm:$0xff] %v432
      %441 = vst [vmem:[%s271 + $0x30] sm:$0xff] %v433
      %442 = vst [vmem:[%s271 + $0x38] sm:$0xff] %v434
      %s443 = smul.u32 2, %s20
      %p444 = scmp.lt.s32.totalorder %s19, 1
      %s445 = scalar_select %p444, %s19, 1
      %p446 = scmp.lt.s32.totalorder %s443, 1
      %s447 = scalar_select %p446, %s443, 1
      %s448 = smul.addr %s445, 8
      %s449 = sadd.s32 %s447, %s448
      %s450 = smul.addr %s449, 8
      %s451 = scalar_lea.vmem %s4, %s450
      // Predicated region
      $region37: #{fourier_layer.1} parent=35 // pred_check
        %p452 = pneg %p145
      $region38: #{fourier_layer.1} parent=35 // pred_check_branch
        %454 = sbr.rel (%p452) target = $region40
      $region39: #{fourier_layer.1} parent=35 // pred_region
        %s455 = smul.u32 2, %s20
      $region40: #{fourier_layer.1} parent=35 // pred_fallthru
        _
    $region36: #{fourier_layer.1} parent=5 // pred_fallthru
      _
    %p456 = scmp.le.s32.totalorder 2, %s10
    // Predicated region
    $region41: #{fourier_layer.1} parent=5 // pred_check
      %p457 = pneg %p456
    $region42: #{fourier_layer.1} parent=5 // pred_check_branch
      %459 = sbr.rel (%p457) target = $region44
    $region43: #{fourier_layer.1} parent=5 // pred_region
      %s460 = ssub.s32 %s10, 2
      // Predicated region
      $region45: #{fourier_layer.1} parent=43 // pred_check
        %p461 = pneg %p151
      $region46: #{fourier_layer.1} parent=43 // pred_check_branch
        %463 = sbr.rel (%p461) target = $region48
      $region47: #{fourier_layer.1} parent=43 // pred_region
        %s464 = smul.u32 2, %s22
        %p465 = scmp.lt.s32.totalorder %s21, 1
        %s466 = scalar_select %p465, %s21, 1
        %p467 = scmp.lt.s32.totalorder %s464, 1
        %s468 = scalar_select %p467, %s464, 1
        %s469 = smul.addr %s466, 8
        %s470 = sadd.s32 %s468, %s469
        %s471 = smul.addr %s470, 8
        %s472 = scalar_lea.vmem %s4, %s471
      $region48: #{fourier_layer.1} parent=43 // pred_fallthru
        _
    $region44: #{fourier_layer.1} parent=5 // pred_fallthru
      _
  $region6: #{fourier_layer.1} parent=0 // loop_footer
    %s14 = sadd.s32 1, %s10
  $region7: #{fourier_layer.1} parent=0 // loop_footer_branch
    %9 = sbr.rel target = $region3
  $region8: #{fourier_layer.1} parent=0 // loop_exit
    _

</llo_original>
